<compile_context>
chip_gen: v6e
topology: v6e:2x2x1
jax: 0.10.0
libtpu: 0.0.40
codegen_flags: <defaults>
</compile_context>

<pallas_src>
import functools
import math

import jax
import jax.numpy as jnp
from jax.experimental import pallas as pl
from jax.experimental.pallas import tpu as pltpu


# ~2 MiB blocks plateau near the HBM roofline on all generations, and the
# double-buffered in+out working set (~8-12 MiB) fits the 32 MiB scoped VMEM
# limit on v5e (16 MiB default raised explicitly), v6e, and v7x (64 MiB phys).
_TARGET_BLOCK_BYTES = 2 * 1024 * 1024
_VMEM_LIMIT_BYTES = 32 * 1024 * 1024
_MIN_BLOCK_BYTES = 512 * 1024       # don't shrink blocks below ~512 KiB
_MIN_PARALLEL_STEPS = 4             # >= 2 grid steps per TC on v7x megacore


def _round_up(x, m):
    return ((x + m - 1) // m) * m


def _sublane_multiple(dtype):
    """Packed-sublane granularity: 8 for f32, 16 for bf16, 32 for int8/fp8."""
    itemsize = jnp.dtype(dtype).itemsize
    return max(8, 32 // max(itemsize, 1))


def _shrink_for_steps(total, tile, multiple, unit_bytes, other_steps=1):
    """Halve `tile` (kept a multiple of `multiple`) until the grid has at least
    _MIN_PARALLEL_STEPS steps, but never below ~_MIN_BLOCK_BYTES per block."""
    while (other_steps * pl.cdiv(total, tile) < _MIN_PARALLEL_STEPS
           and tile > multiple
           and tile * unit_bytes >= 2 * _MIN_BLOCK_BYTES):
        new = max(multiple, _round_up(tile // 2, multiple))
        if new >= tile:
            break
        tile = new
    return tile


def _choose_row_tile(total_rows, row_bytes, dtype):
    """Sublane (second-minor) tile: dtype-aware multiple, ~2 MiB blocks, and
    >= _MIN_PARALLEL_STEPS grid steps whenever blocks are big enough."""
    sub = _sublane_multiple(dtype)
    if total_rows <= sub:
        return total_rows                              # full extent — legal
    tile = max(sub, (_TARGET_BLOCK_BYTES // max(row_bytes, 1)) // sub * sub)
    if tile >= total_rows:
        tile = total_rows                              # full extent — legal
    return _shrink_for_steps(total_rows, tile, sub, row_bytes)


def _choose_lane_tile(total_lanes, col_bytes):
    """Lane (minor) tile: multiple of 128 (partial trailing block is fine)."""
    tile = max(128, (_TARGET_BLOCK_BYTES // max(col_bytes, 1)) // 128 * 128)
    tile = min(tile, max(128, (total_lanes // 128) * 128))
    return tile


# --------------------------------------------------------------------------- #
# Kernels (all two-pass centered variance, matching the PyTorch reference)
# --------------------------------------------------------------------------- #
def _ln_channels_first_kernel(x_ref, w_ref, b_ref, o_ref, *, eps, inv_c):
    # x_ref/o_ref: (tile_n, C, tile_hw); w_ref/b_ref: (1, C, 1).
    # Normalize over the C (sublane) axis; spatial lanes stay dense.
    x = x_ref[...].astype(jnp.float32)
    mean = jnp.sum(x, axis=1, keepdims=True) * inv_c
    xc = x - mean
    var = jnp.sum(xc * xc, axis=1, keepdims=True) * inv_c
    inv = jax.lax.rsqrt(var + eps)
    w = w_ref[...].astype(jnp.float32)
    b = b_ref[...].astype(jnp.float32)
    o_ref[...] = (xc * inv * w + b).astype(o_ref.dtype)


def _ln_rows_kernel(x_ref, w_ref, b_ref, o_ref, *, eps, inv_c):
    # x_ref/o_ref: (T, C), w_ref/b_ref: (1, C). Normalize over last (lane) dim.
    x = x_ref[...].astype(jnp.float32)
    mean = jnp.sum(x, axis=-1, keepdims=True) * inv_c
    xc = x - mean
    var = jnp.sum(xc * xc, axis=-1, keepdims=True) * inv_c
    inv = jax.lax.rsqrt(var + eps)
    w = w_ref[...].astype(jnp.float32)
    b = b_ref[...].astype(jnp.float32)
    o_ref[...] = (xc * inv * w + b).astype(o_ref.dtype)


def _ln_grouped_kernel(x_ref, w_ref, b_ref, m_ref, mt_ref, o_ref, *, eps, inv_c):
    # x_ref/o_ref: (T, G*C), lane-dense; each row holds G independent groups of
    # width C.  m_ref: (G*C, G) 0/1 group-sum matrix, mt_ref: (G, G*C) its
    # transpose (broadcast-back).  Group reductions run on the otherwise-idle
    # MXU so HBM traffic stays fully lane-dense (no masked narrow stores).
    hi = jax.lax.Precision.HIGHEST  # keep f32 accuracy through the MXU
    x = x_ref[...].astype(jnp.float32)
    m = m_ref[...]
    mt = mt_ref[...]
    s_g = jnp.dot(x, m, precision=hi, preferred_element_type=jnp.float32)
    mean = jnp.dot(s_g * inv_c, mt, precision=hi, preferred_element_type=jnp.float32)
    xc = x - mean
    v_g = jnp.dot(xc * xc, m, precision=hi, preferred_element_type=jnp.float32)
    var = jnp.dot(v_g * inv_c, mt, precision=hi, preferred_element_type=jnp.float32)
    inv = jax.lax.rsqrt(var + eps)
    w = w_ref[...].astype(jnp.float32)
    b = b_ref[...].astype(jnp.float32)
    o_ref[...] = (xc * inv * w + b).astype(o_ref.dtype)


# --------------------------------------------------------------------------- #
# Wrappers
# --------------------------------------------------------------------------- #
def _layernorm_channels_first(x, weight, bias, eps):
    """NCHW LayerNorm over C, in native layout (no transposes)."""
    n, c, h, w = x.shape
    hw = h * w
    x3 = x.reshape(n, c, hw)                        # free reshape
    w3 = weight.astype(jnp.float32).reshape(1, c, 1)
    b3 = bias.astype(jnp.float32).reshape(1, c, 1)

    itemsize = jnp.dtype(x.dtype).itemsize
    sub = _sublane_multiple(x.dtype)
    c_pad = _round_up(c, sub)                       # physical sublane footprint
    col_bytes = c_pad * itemsize                    # padded bytes per lane
    slab_bytes = c_pad * _round_up(hw, 128) * itemsize  # padded per-image slab

    if slab_bytes <= _TARGET_BLOCK_BYTES or hw < 128:
        # Small per-image slab: fold several images into one lane/sublane-dense
        # block to amortize the ~0.35 us per-step overhead.
        tile_hw = hw
        tile_n = max(1, min(n, _TARGET_BLOCK_BYTES // max(slab_bytes, 1)))
        tile_n = _shrink_for_steps(n, tile_n, 1, slab_bytes)
    else:
        # Large feature map: tile the spatial (lane) axis per image.
        tile_n = 1
        tile_hw = _choose_lane_tile(hw, col_bytes)
        tile_hw = _shrink_for_steps(hw, tile_hw, 128, col_bytes, other_steps=n)

    grid = (pl.cdiv(n, tile_n), pl.cdiv(hw, tile_hw))
    out = pl.pallas_call(
        functools.partial(_ln_channels_first_kernel, eps=eps, inv_c=1.0 / c),
        out_shape=jax.ShapeDtypeStruct((n, c, hw), x.dtype),
        grid_spec=pltpu.PrefetchScalarGridSpec(
            num_scalar_prefetch=0,
            grid=grid,
            in_specs=[
                pl.BlockSpec((tile_n, c, tile_hw), lambda i, j: (i, 0, j)),
                pl.BlockSpec((1, c, 1), lambda i, j: (0, 0, 0)),
                pl.BlockSpec((1, c, 1), lambda i, j: (0, 0, 0)),
            ],
            out_specs=pl.BlockSpec((tile_n, c, tile_hw), lambda i, j: (i, 0, j)),
        ),
        compiler_params=pltpu.CompilerParams(
            dimension_semantics=("parallel", "parallel"),
            vmem_limit_bytes=_VMEM_LIMIT_BYTES,
        ),
    )(x3, w3, b3)
    return out.reshape(n, c, h, w)


def _layernorm_rows(x2d, weight, bias, eps):
    """Plain (rows, C) LayerNorm over the last dim (best when C % 128 == 0)."""
    rows, c = x2d.shape
    itemsize = jnp.dtype(x2d.dtype).itemsize
    row_bytes = _round_up(c, 128) * itemsize        # padded lane footprint
    tile_rows = _choose_row_tile(rows, row_bytes, x2d.dtype)
    grid = (pl.cdiv(rows, tile_rows),)
    w2 = weight.astype(jnp.float32).reshape(1, c)
    b2 = bias.astype(jnp.float32).reshape(1, c)
    return pl.pallas_call(
        functools.partial(_ln_rows_kernel, eps=eps, inv_c=1.0 / c),
        out_shape=jax.ShapeDtypeStruct((rows, c), x2d.dtype),
        grid_spec=pltpu.PrefetchScalarGridSpec(
            num_scalar_prefetch=0,
            grid=grid,
            in_specs=[
                pl.BlockSpec((tile_rows, c), lambda i: (i, 0)),
                pl.BlockSpec((1, c), lambda i: (0, 0)),
                pl.BlockSpec((1, c), lambda i: (0, 0)),
            ],
            out_specs=pl.BlockSpec((tile_rows, c), lambda i: (i, 0)),
        ),
        compiler_params=pltpu.CompilerParams(
            dimension_semantics=("parallel",),
            vmem_limit_bytes=_VMEM_LIMIT_BYTES,
        ),
    )(x2d, w2, b2)


def _layernorm_grouped(x2d, weight, bias, eps, g):
    """Small-C channels_last: pack G rows per lane-dense block of width G*C."""
    rows, c = x2d.shape
    w_lane = g * c
    rows_g = rows // g
    xg = x2d.reshape(rows_g, w_lane)                # free reshape (contiguous)
    w_t = jnp.tile(weight.astype(jnp.float32), g).reshape(1, w_lane)
    b_t = jnp.tile(bias.astype(jnp.float32), g).reshape(1, w_lane)
    # 0/1 segment matrices: m[j, k] = 1 iff lane j belongs to group k.
    grp = jnp.arange(w_lane, dtype=jnp.int32) // c
    m = (grp[:, None] == jnp.arange(g, dtype=jnp.int32)[None, :]).astype(jnp.float32)
    mt = m.T

    itemsize = jnp.dtype(x2d.dtype).itemsize
    row_bytes = w_lane * itemsize                   # w_lane is a multiple of 128
    tile_r = _choose_row_tile(rows_g, row_bytes, x2d.dtype)
    grid = (pl.cdiv(rows_g, tile_r),)
    out = pl.pallas_call(
        functools.partial(_ln_grouped_kernel, eps=eps, inv_c=1.0 / c),
        out_shape=jax.ShapeDtypeStruct((rows_g, w_lane), x2d.dtype),
        grid_spec=pltpu.PrefetchScalarGridSpec(
            num_scalar_prefetch=0,
            grid=grid,
            in_specs=[
                pl.BlockSpec((tile_r, w_lane), lambda i: (i, 0)),
                pl.BlockSpec((1, w_lane), lambda i: (0, 0)),
                pl.BlockSpec((1, w_lane), lambda i: (0, 0)),
                pl.BlockSpec((w_lane, g), lambda i: (0, 0)),
                pl.BlockSpec((g, w_lane), lambda i: (0, 0)),
            ],
            out_specs=pl.BlockSpec((tile_r, w_lane), lambda i: (i, 0)),
        ),
        compiler_params=pltpu.CompilerParams(
            dimension_semantics=("parallel",),
            vmem_limit_bytes=_VMEM_LIMIT_BYTES,
        ),
    )(xg, w_t, b_t, m, mt)
    return out.reshape(rows, c)


def _layernorm_channels_last(x2d, weight, bias, eps):
    rows, c = x2d.shape
    if c % 128 == 0:
        return _layernorm_rows(x2d, weight, bias, eps)      # already lane-dense
    w_lane = (c * 128) // math.gcd(c, 128)                  # lcm(c, 128)
    g = w_lane // c
    if w_lane > 2048:
        # TODO(synk): C with lcm(C,128) > 2048 stays on the lane-sparse row
        # kernel (masked narrow stores); add a padded-C variant if such shapes
        # ever show up in this model.
        return _layernorm_rows(x2d, weight, bias, eps)
    rows_main = (rows // g) * g
    if rows_main == rows:
        return _layernorm_grouped(x2d, weight, bias, eps, g)
    if rows_main == 0:
        return _layernorm_rows(x2d, weight, bias, eps)       # tiny tensor
    # Ragged rows: lane-dense grouped kernel on the divisible prefix, tiny
    # (< g-row) tail on the row kernel.  One concat copy of the output beats
    # routing the whole tensor to the ~4.5x slower masked-store fallback.
    y_main = _layernorm_grouped(x2d[:rows_main], weight, bias, eps, g)
    y_tail = _layernorm_rows(x2d[rows_main:], weight, bias, eps)
    return jnp.concatenate([y_main, y_tail], axis=0)


class LayerNormPallas:
    """Mirror of the PyTorch LayerNorm module (forward only)."""

    def __init__(self, normalized_shape, eps=1e-6, data_format="channels_last"):
        if data_format not in ("channels_last", "channels_first"):
            raise ValueError(f"not support data format '{data_format}'")
        self.eps = eps
        self.data_format = data_format
        self.normalized_shape = (normalized_shape,)
        # Same init as nn.Parameter(torch.ones/zeros).
        self.weight = jnp.ones((normalized_shape,), dtype=jnp.float32)
        self.bias = jnp.zeros((normalized_shape,), dtype=jnp.float32)

    def __call__(self, x):
        c = self.normalized_shape[0]
        if self.data_format == "channels_last":
            orig_shape = x.shape
            assert orig_shape[-1] == c
            y = _layernorm_channels_last(x.reshape(-1, c), self.weight, self.bias,
                                         self.eps)
            return y.reshape(orig_shape)
        else:
            assert x.ndim == 4 and x.shape[1] == c
            return _layernorm_channels_first(x, self.weight, self.bias, self.eps)


# --------------------------------------------------------------------------- #
# References + test
# --------------------------------------------------------------------------- #
def _ref_channels_first(x, weight, bias, eps):
    mean = jnp.mean(x, axis=1, keepdims=True)
    var = jnp.mean((x - mean) ** 2, axis=1, keepdims=True)
    xn = (x - mean) / jnp.sqrt(var + eps)
    return weight[None, :, None, None] * xn + bias[None, :, None, None]


def _ref_channels_last(x, weight, bias, eps):
    mean = jnp.mean(x, axis=-1, keepdims=True)
    var = jnp.mean((x - mean) ** 2, axis=-1, keepdims=True)
    xn = (x - mean) / jnp.sqrt(var + eps)
    return xn * weight + bias


if __name__ == "__main__":
    key = jax.random.PRNGKey(0)
    k1, k2, k3, k4, k5, k6 = jax.random.split(key, 6)

    C = 4
    wts = jax.random.normal(k3, (C,), dtype=jnp.float32)
    bss = jax.random.normal(k4, (C,), dtype=jnp.float32)

    # 1) channels_first: NCHW input, normalized over C in native layout.
    x_cf = jax.random.normal(k1, (2, C, 16, 16), dtype=jnp.float32)
    ln_cf = LayerNormPallas(C, eps=1e-6, data_format="channels_first")
    ln_cf.weight, ln_cf.bias = wts, bss
    y_cf = jax.block_until_ready(ln_cf(x_cf))
    ref_cf = _ref_channels_first(x_cf, wts, bss, ln_cf.eps)
    assert y_cf.shape == x_cf.shape
    assert jnp.allclose(y_cf, ref_cf, atol=2e-5, rtol=2e-5)

    # 2) channels_last, small C, rows divisible by the packing group -> grouped.
    x_cl = jax.random.normal(k2, (2, 16, 16, C), dtype=jnp.float32)
    ln_cl = LayerNormPallas(C, eps=1e-6, data_format="channels_last")
    ln_cl.weight, ln_cl.bias = bss, wts
    y_cl = jax.block_until_ready(ln_cl(x_cl))
    ref_cl = _ref_channels_last(x_cl, bss, wts, ln_cl.eps)
    assert y_cl.shape == x_cl.shape
    assert jnp.allclose(y_cl, ref_cl, atol=2e-5, rtol=2e-5)

    # 3) channels_last, ragged row count (50 rows, group size 32) -> prefix
    #    grouped + tail row kernel.
    x_rg = jax.random.normal(k5, (5, 10, C), dtype=jnp.float32)
    y_rg = jax.block_until_ready(ln_cl(x_rg))
    ref_rg = _ref_channels_last(x_rg, bss, wts, ln_cl.eps)
    assert y_rg.shape == x_rg.shape
    assert jnp.allclose(y_rg, ref_rg, atol=2e-5, rtol=2e-5)

    # 4) channels_last, C multiple of 128 -> plain lane-dense row kernel.
    C2 = 128
    x_big = jax.random.normal(k6, (2, 8, C2), dtype=jnp.float32)
    ln_big = LayerNormPallas(C2, eps=1e-6, data_format="channels_last")
    y_big = jax.block_until_ready(ln_big(x_big))
    ref_big = _ref_channels_last(x_big, ln_big.weight, ln_big.bias, ln_big.eps)
    assert y_big.shape == x_big.shape
    assert jnp.allclose(y_big, ref_big, atol=2e-5, rtol=2e-5)

    print("KERNEL_OK")
</pallas_src>

<mosaic_0001>
module attributes {stable_mosaic.version = 11 : i64} {
  func.func @_ln_channels_first_kernel(%arg0: i32, %arg1: i32, %arg2: memref<2x4x256xf32, #tpu.memory_space<vmem>>, %arg3: memref<1x4x1xf32, #tpu.memory_space<vmem>>, %arg4: memref<1x4x1xf32, #tpu.memory_space<vmem>>, %arg5: memref<2x4x256xf32, #tpu.memory_space<vmem>>) attributes {dimension_semantics = [#tpu.dimension_semantics<parallel>, #tpu.dimension_semantics<parallel>], iteration_bounds = array<i64: 1, 1>, scalar_prefetch = 0 : i64, scratch_operands = 0 : i64, tpu.core_type = #tpu.core_type<tc>, window_params = [{transform_indices = @transform_0, window_bounds = array<i64: 2, 4, 256>}, {pipeline_mode = #tpu.pipeline_mode<synchronous>, transform_indices = @transform_1, window_bounds = array<i64: 1, 4, 1>}, {pipeline_mode = #tpu.pipeline_mode<synchronous>, transform_indices = @transform_2, window_bounds = array<i64: 1, 4, 1>}, {transform_indices = @transform_3, window_bounds = array<i64: 2, 4, 256>}]} {
    %c0 = arith.constant 0 : index
    %c0_0 = arith.constant 0 : index
    %c0_1 = arith.constant 0 : index
    %0 = vector.load %arg2[%c0, %c0_0, %c0_1] : memref<2x4x256xf32, #tpu.memory_space<vmem>>, vector<2x4x256xf32>
    %cst = arith.constant dense<0.000000e+00> : vector<2x256xf32>
    %1 = vector.multi_reduction <add>, %0, %cst [1] : vector<2x4x256xf32> to vector<2x256xf32>
    %2 = vector.shape_cast %1 : vector<2x256xf32> to vector<2x1x256xf32>
    %cst_2 = arith.constant 2.500000e-01 : f32
    %3 = vector.broadcast %cst_2 : f32 to vector<2x1x256xf32>
    %4 = arith.mulf %2, %3 : vector<2x1x256xf32>
    %5 = vector.broadcast %4 : vector<2x1x256xf32> to vector<2x4x256xf32>
    %6 = arith.subf %0, %5 : vector<2x4x256xf32>
    %7 = arith.mulf %6, %6 : vector<2x4x256xf32>
    %cst_3 = arith.constant dense<0.000000e+00> : vector<2x256xf32>
    %8 = vector.multi_reduction <add>, %7, %cst_3 [1] : vector<2x4x256xf32> to vector<2x256xf32>
    %9 = vector.shape_cast %8 : vector<2x256xf32> to vector<2x1x256xf32>
    %cst_4 = arith.constant 2.500000e-01 : f32
    %10 = vector.broadcast %cst_4 : f32 to vector<2x1x256xf32>
    %11 = arith.mulf %9, %10 : vector<2x1x256xf32>
    %cst_5 = arith.constant 9.99999997E-7 : f32
    %12 = vector.broadcast %cst_5 : f32 to vector<2x1x256xf32>
    %13 = arith.addf %11, %12 : vector<2x1x256xf32>
    %14 = math.rsqrt %13 : vector<2x1x256xf32>
    %c0_6 = arith.constant 0 : index
    %c0_7 = arith.constant 0 : index
    %c0_8 = arith.constant 0 : index
    %15 = vector.load %arg3[%c0_6, %c0_7, %c0_8] : memref<1x4x1xf32, #tpu.memory_space<vmem>>, vector<1x4x1xf32>
    %c0_9 = arith.constant 0 : index
    %c0_10 = arith.constant 0 : index
    %c0_11 = arith.constant 0 : index
    %16 = vector.load %arg4[%c0_9, %c0_10, %c0_11] : memref<1x4x1xf32, #tpu.memory_space<vmem>>, vector<1x4x1xf32>
    %17 = vector.broadcast %14 : vector<2x1x256xf32> to vector<2x4x256xf32>
    %18 = arith.mulf %6, %17 : vector<2x4x256xf32>
    %19 = vector.broadcast %15 : vector<1x4x1xf32> to vector<2x4x256xf32>
    %20 = arith.mulf %18, %19 : vector<2x4x256xf32>
    %21 = vector.broadcast %16 : vector<1x4x1xf32> to vector<2x4x256xf32>
    %22 = arith.addf %20, %21 : vector<2x4x256xf32>
    %c0_12 = arith.constant 0 : index
    %c0_13 = arith.constant 0 : index
    %c0_14 = arith.constant 0 : index
    %23 = vector.load %arg5[%c0_12, %c0_13, %c0_14] : memref<2x4x256xf32, #tpu.memory_space<vmem>>, vector<2x4x256xf32>
    tpu.vector_store %arg5[%c0_12, %c0_13, %c0_14], %22 {strides = array<i32>} : memref<2x4x256xf32, #tpu.memory_space<vmem>>, vector<2x4x256xf32>,
    return
  }
  func.func @transform_0(%arg0: i32, %arg1: i32) -> (i32, i32, i32) {
    %c0_i32 = arith.constant 0 : i32
    %c0_i32_0 = arith.constant 0 : i32
    return %arg0, %c0_i32, %arg1 : i32, i32, i32
  }
  func.func @transform_1(%arg0: i32, %arg1: i32) -> (i32, i32, i32) {
    %c0_i32 = arith.constant 0 : i32
    %c0_i32_0 = arith.constant 0 : i32
    %c0_i32_1 = arith.constant 0 : i32
    %c0_i32_2 = arith.constant 0 : i32
    return %c0_i32, %c0_i32_0, %c0_i32_1 : i32, i32, i32
  }
  func.func @transform_2(%arg0: i32, %arg1: i32) -> (i32, i32, i32) {
    %c0_i32 = arith.constant 0 : i32
    %c0_i32_0 = arith.constant 0 : i32
    %c0_i32_1 = arith.constant 0 : i32
    %c0_i32_2 = arith.constant 0 : i32
    return %c0_i32, %c0_i32_0, %c0_i32_1 : i32, i32, i32
  }
  func.func @transform_3(%arg0: i32, %arg1: i32) -> (i32, i32, i32) {
    %c0_i32 = arith.constant 0 : i32
    %c0_i32_0 = arith.constant 0 : i32
    return %arg0, %c0_i32, %arg1 : i32, i32, i32
  }
}

</mosaic_0001>

<llo_original>
// kernel: tpu_custom_call.1
$region0: #{tpu_custom_call.1}
  #allocation0 [shape = 'u32[]', space=smem, size = 0x4, offset = 0x4, fixed_abs, tag = 'smem constant byte address 0x4 - core index']
  #allocation1 [shape = 'u32[144,128]{1,0:T(1,128)}', space=vmem, size = 0x12000, scoped, tag = 'internal scratch']
  %s0 = inlined_call_operand.hbm [shape: f32[2,4,256], index: 0, kind: input, shape index: {}]
  %s1 = inlined_call_operand.vmem [shape: f32[1,4,1], index: 1, kind: input, shape index: {}]
  %s2 = inlined_call_operand.vmem [shape: f32[1,4,1], index: 2, kind: input, shape index: {}]
  %s3 = inlined_call_operand.hbm [shape: f32[2,4,256], index: 3, kind: output, shape index: {}]
  %s4 = sld [smem:[#allocation0]]
  $region26: #{tpu_custom_call.1} parent=0
    _
  %s6 = ssub.s32 1, %s4
  %s7 = scalar_select 0, %s6, %s4
  $region1: #{tpu_custom_call.1} parent=0
    #allocation2 [shape = 'u8[8192]{0}', space=vmem, size = 0x2000, scoped, tag = 'input window, operand 0, single buffered']
    #allocation3 [shape = 's32[1]{0}', space=sflag, size = 0x4, scoped, tag = 'scoped memory for tpu_custom_call.1']
    #allocation4 [shape = 's32[1]{0}', space=sflag, size = 0x4, scoped, tag = 'scoped memory for tpu_custom_call.1']
    #allocation5 [shape = 'u8[8192]{0}', space=vmem, size = 0x2000, scoped, tag = 'output window, operand 0, single buffered']
    %8 = vsyncpa [#allocation3], 0
    %9 = vsyncpa [#allocation4], 0
    // Predicated region
    $region2: #{tpu_custom_call.1} parent=1 // pred_check
      _
    $region3: #{tpu_custom_call.1} parent=1 // pred_check_branch
      %11 = sbr.rel (0) target = $region5
    $region4: #{tpu_custom_call.1} parent=1 // pred_region
      %s13 = ssub.s32 256, 256
      %14 = vsyncadd [#allocation3], %s13
      %s15 = sshll.u32 [#allocation2], 4
      %s16 = int_to_ptr.vmem [resolvable:$true] %s15
      %21 = dma.hbm_to_vmem [thread:$0]  %s0, 256, %s16, [#allocation3], 128, 128, 8
    $region5: #{tpu_custom_call.1} parent=1 // pred_fallthru
      _
    // Predicated region
    $region6: #{tpu_custom_call.1} parent=1 // pred_check
      _
    $region7: #{tpu_custom_call.1} parent=1 // pred_check_branch
      %23 = sbr.rel (0) target = $region9
    $region8: #{tpu_custom_call.1} parent=1 // pred_region
      _
    $region9: #{tpu_custom_call.1} parent=1 // pred_fallthru
      _
    // Predicated region
    $region10: #{tpu_custom_call.1} parent=1 // pred_check
      _
    $region11: #{tpu_custom_call.1} parent=1 // pred_check_branch
      %25 = sbr.rel (0) target = $region13
    $region12: #{tpu_custom_call.1} parent=1 // pred_region
      _
    $region13: #{tpu_custom_call.1} parent=1 // pred_fallthru
      _
    // Predicated region
    $region14: #{tpu_custom_call.1} parent=1 // pred_check
      _
    $region15: #{tpu_custom_call.1} parent=1 // pred_check_branch
      %27 = sbr.rel (0) target = $region17
    $region16: #{tpu_custom_call.1} parent=1 // pred_region
      %28 = dma.done [#allocation3], 256
    $region17: #{tpu_custom_call.1} parent=1 // pred_fallthru
      _
    %v29 = vld [vmem:[#allocation2] sm:$0xff]
    %v30 = vld [vmem:[#allocation2 + $0x8] sm:$0xff]
    %v33 = vcombine.high %v29, %v29
    %v34 = vcombine.high %v30, %v30
    %vm37 = vcmask 1043456
    %v38 = vsel %vm37, %v29, 0.0
    %v39 = vrot.slane %v38, 4
    %v40 = vadd.f32 %v38, %v39
    %v41 = vrot.slane %v40, 2
    %v42 = vadd.f32 %v40, %v41
    %v43 = vrot.slane %v42, 1
    %v44 = vadd.f32 %v42, %v43
    %v45 = vsel %vm37, %v33, 0.0
    %v46 = vrot.slane %v45, 4
    %v47 = vadd.f32 %v45, %v46
    %v48 = vrot.slane %v47, 2
    %v49 = vadd.f32 %v47, %v48
    %v50 = vrot.slane %v49, 1
    %v51 = vadd.f32 %v49, %v50
    %v52 = vsel %vm37, %v30, 0.0
    %v53 = vrot.slane %v52, 4
    %v54 = vadd.f32 %v52, %v53
    %v55 = vrot.slane %v54, 2
    %v56 = vadd.f32 %v54, %v55
    %v57 = vrot.slane %v56, 1
    %v58 = vadd.f32 %v56, %v57
    %v59 = vsel %vm37, %v34, 0.0
    %v60 = vrot.slane %v59, 4
    %v61 = vadd.f32 %v59, %v60
    %v62 = vrot.slane %v61, 2
    %v63 = vadd.f32 %v61, %v62
    %v64 = vrot.slane %v63, 1
    %v65 = vadd.f32 %v63, %v64
    %v66 = vmul.f32 %v44, 0.25
    %v67 = vmul.f32 %v51, 0.25
    %v68 = vmul.f32 %v58, 0.25
    %v69 = vmul.f32 %v65, 0.25
    %v74 = vcombine.low %v66, %v67
    %v75 = vcombine.low %v68, %v69
    %v78 = vsub.f32 %v29, %v74
    %v79 = vsub.f32 %v30, %v75
    %v80 = vmul.f32 %v78, %v78
    %v81 = vmul.f32 %v79, %v79
    %v84 = vcombine.high %v80, %v80
    %v85 = vcombine.high %v81, %v81
    %v88 = vsel %vm37, %v80, 0.0
    %v89 = vrot.slane %v88, 4
    %v90 = vadd.f32 %v88, %v89
    %v91 = vrot.slane %v90, 2
    %v92 = vadd.f32 %v90, %v91
    %v93 = vrot.slane %v92, 1
    %v94 = vadd.f32 %v92, %v93
    %v95 = vsel %vm37, %v84, 0.0
    %v96 = vrot.slane %v95, 4
    %v97 = vadd.f32 %v95, %v96
    %v98 = vrot.slane %v97, 2
    %v99 = vadd.f32 %v97, %v98
    %v100 = vrot.slane %v99, 1
    %v101 = vadd.f32 %v99, %v100
    %v102 = vsel %vm37, %v81, 0.0
    %v103 = vrot.slane %v102, 4
    %v104 = vadd.f32 %v102, %v103
    %v105 = vrot.slane %v104, 2
    %v106 = vadd.f32 %v104, %v105
    %v107 = vrot.slane %v106, 1
    %v108 = vadd.f32 %v106, %v107
    %v109 = vsel %vm37, %v85, 0.0
    %v110 = vrot.slane %v109, 4
    %v111 = vadd.f32 %v109, %v110
    %v112 = vrot.slane %v111, 2
    %v113 = vadd.f32 %v111, %v112
    %v114 = vrot.slane %v113, 1
    %v115 = vadd.f32 %v113, %v114
    %v116 = vmul.f32 %v94, 0.25
    %v117 = vmul.f32 %v101, 0.25
    %v118 = vmul.f32 %v108, 0.25
    %v119 = vmul.f32 %v115, 0.25
    %v120 = vadd.f32 %v116, 1e-06
    %v121 = vadd.f32 %v117, 1e-06
    %v122 = vadd.f32 %v118, 1e-06
    %v123 = vadd.f32 %v119, 1e-06
    %v124 = vrsqrt.pop %v120
    %v125 = vrsqrt.pop %v121
    %v126 = vrsqrt.pop %v122
    %v127 = vrsqrt.pop %v123
    %v128 = vld [vmem:[%s1] sm:$0xf]
    %v129 = vld [vmem:[%s2] sm:$0xf]
    %v134 = vcombine.low %v124, %v125
    %v135 = vcombine.low %v126, %v127
    %v138 = vmul.f32 %v78, %v134
    %v139 = vmul.f32 %v79, %v135
    %141 = vset.pattern.permute.xlu0 0
    %142 = vperm.xlu0 %141, %v128
    %v143 = vpop.permute.xlu0 %142
    %v145 = vunpack.c.l.s4 839922192
    %v146 = vunpack.c.0.s8 %v145
    %v147 = vlaneseq
    %v148 = vshrl.u32 %v147, 7
    %v149 = vsub.s32 %v146, %v148
    %v150 = vrot.slane %v143, %v149
    %v152 = vmul.f32 %v138, %v150
    %v153 = vmul.f32 %v139, %v150
    %155 = vset.pattern.permute.xlu0 0
    %156 = vperm.xlu0 %155, %v129
    %v157 = vpop.permute.xlu0 %156
    %v159 = vunpack.c.l.s4 839922192
    %v160 = vunpack.c.0.s8 %v159
    %v161 = vlaneseq
    %v162 = vshrl.u32 %v161, 7
    %v163 = vsub.s32 %v160, %v162
    %v164 = vrot.slane %v157, %v163
    %v166 = vadd.f32 %v152, %v164
    %v167 = vadd.f32 %v153, %v164
    %168 = vst [vmem:[#allocation5] sm:$0xff] %v166
    %169 = vst [vmem:[#allocation5 + $0x8] sm:$0xff] %v167
    // Predicated region
    $region18: #{tpu_custom_call.1} parent=1 // pred_check
      _
    $region19: #{tpu_custom_call.1} parent=1 // pred_check_branch
      %171 = sbr.rel (0) target = $region21
    $region20: #{tpu_custom_call.1} parent=1 // pred_region
      %s173 = ssub.s32 256, 256
      %174 = vsyncadd [#allocation4], %s173
      %s175 = sshll.u32 [#allocation5], 4
      %s176 = int_to_ptr.vmem [resolvable:$true] %s175
      %181 = dma.vmem_to_hbm [thread:$0]  %s176, 256, %s3, [#allocation4], 128, 128, 8
    $region21: #{tpu_custom_call.1} parent=1 // pred_fallthru
      _
    // Predicated region
    $region22: #{tpu_custom_call.1} parent=1 // pred_check
      _
    $region23: #{tpu_custom_call.1} parent=1 // pred_check_branch
      %183 = sbr.rel (0) target = $region25
    $region24: #{tpu_custom_call.1} parent=1 // pred_region
      %184 = dma.done [#allocation4], 256
    $region25: #{tpu_custom_call.1} parent=1 // pred_fallthru
      _
    %185 = vsyncpa [#allocation3], 1
    %186 = vsyncpa [#allocation4], 1

</llo_original>
